<compile_context>
chip_gen: v5e
topology: v5e:2x2
jax: 0.10.0
libtpu: 0.0.40
codegen_flags: <defaults>
</compile_context>

<pallas_src>
import functools
import math

import jax
import jax.numpy as jnp
from jax import lax
from jax.experimental import pallas as pl
from jax.experimental.pallas import tpu as pltpu

_LANES = 128        # vreg lane width
_BLOCK_ROWS = 512   # 512*128*4B = 256 KiB per output block when gridded


def _annealing_table_kernel(params_ref, out_ref):
    """out[r, c] = base + half_delta * cos(inv_l * (row0 + r)*128 + inv_l * c).

    params_ref (SMEM, f32[3]) = [alpha1 + half_delta, half_delta, pi / L].
    Entries with flat index >= L are padding and discarded by the host.
    """
    base = params_ref[0]         # alpha1 + half_delta  (folds the "1 + cos")
    half_delta = params_ref[1]
    inv_l = params_ref[2]        # pi / L

    block_rows, lanes = out_ref.shape
    row_scale = inv_l * lanes                                   # pi*128/L (scalar)
    row_off = (pl.program_id(0) * block_rows).astype(jnp.float32) * row_scale

    r = lax.broadcasted_iota(jnp.int32, (block_rows, lanes), 0).astype(jnp.float32)
    c = lax.broadcasted_iota(jnp.int32, (block_rows, lanes), 1).astype(jnp.float32)
    theta = (r * row_scale + row_off) + c * inv_l               # pi * m / L
    out_ref[...] = base + half_delta * jnp.cos(theta)


@functools.partial(jax.jit, static_argnames=("rows", "block_rows"))
def _run_table(params, *, rows, block_rows):
    """Build the padded (rows, 128) f32 annealing table on device."""
    grid = (pl.cdiv(rows, block_rows),)
    return pl.pallas_call(
        _annealing_table_kernel,
        out_shape=jax.ShapeDtypeStruct((rows, _LANES), jnp.float32),
        grid_spec=pltpu.PrefetchScalarGridSpec(
            num_scalar_prefetch=1,
            grid=grid,
            in_specs=[],
            out_specs=pl.BlockSpec((block_rows, _LANES),
                                   lambda i, params: (i, 0)),
        ),
        compiler_params=pltpu.CompilerParams(
            dimension_semantics=("parallel",),
            vmem_limit_bytes=32 << 20),
    )(params)


def _build_annealing_table(L, alpha1, alpha2):
    half_delta = 0.5 * (float(alpha2) - float(alpha1))
    params = jnp.array(
        [float(alpha1) + half_delta, half_delta, math.pi / float(L)],
        dtype=jnp.float32)
    rows = pl.cdiv(int(L), _LANES)
    block_rows = rows if rows <= _BLOCK_ROWS else _BLOCK_ROWS
    slab = _run_table(params, rows=rows, block_rows=block_rows)
    # One-time readback of the table; forward() never touches the device again.
    return jax.device_get(slab).reshape(-1)[:L]


class CyclicAnnealing:
    """JAX/Pallas port of the PyTorch CyclicAnnealing module."""

    def __init__(self, L: int, M: int, warmup_epochs: int = 5,
                 alpha1: float = 0.0, alpha2: float = 1.0) -> None:
        self.update_type = "epoch"
        self.L = L
        self.M = M
        self.warmup_epochs = warmup_epochs
        self.alpha1 = alpha1
        self.alpha2 = alpha2
        self.current_epoch = 0
        # Run the Pallas kernel once; the schedule is periodic with period L.
        self._table = _build_annealing_table(L, alpha1, alpha2)

    def forward(self, current_epoch: int) -> float:
        # Warmup branch and integer modulo stay on the host in exact integer
        # math, matching the PyTorch module's own Python control flow.
        self.current_epoch += 1
        if current_epoch < self.warmup_epochs:
            return float(self.alpha1)
        return float(self._table[(current_epoch - self.warmup_epochs) % self.L])

    __call__ = forward


def _reference(current_epoch, L, warmup_epochs, alpha1, alpha2):
    if current_epoch < warmup_epochs:
        return alpha1
    epoch_adj = current_epoch - warmup_epochs
    return alpha1 + 0.5 * (alpha2 - alpha1) * (
        1 + math.cos(math.pi * (epoch_adj % L) / L))


if __name__ == "__main__":
    ok = True

    # --- Direct kernel run (gridless whole-array block), explicit device sync.
    params0 = jnp.array([0.5, 0.5, math.pi / 4.0], dtype=jnp.float32)
    slab0 = jax.block_until_ready(_run_table(params0, rows=1, block_rows=1))
    assert slab0.shape == (1, _LANES) and slab0.dtype == jnp.float32

    # --- Gridded path (grid > 1) on a tiny table: rows=16, block_rows=8.
    L_grid = 16 * _LANES  # 2048 entries, ~8 KiB
    params_g = jnp.array([0.5, 0.5, math.pi / L_grid], dtype=jnp.float32)
    slab_g = jax.block_until_ready(_run_table(params_g, rows=16, block_rows=8))
    idx = jnp.arange(L_grid, dtype=jnp.float32)
    want_g = 0.5 + 0.5 * jnp.cos(jnp.pi * idx / L_grid)
    got_g = slab_g.reshape(-1)[:L_grid]
    if not bool(jnp.allclose(got_g, want_g, atol=1e-5)):
        ok = False
        print("MISMATCH gridded table")

    # --- Module-level checks against the PyTorch reference formula.
    configs = [
        dict(L=4, M=3, warmup_epochs=5, alpha1=0.0, alpha2=1.0),
        dict(L=7, M=2, warmup_epochs=3, alpha1=0.2, alpha2=0.8),
        dict(L=300, M=2, warmup_epochs=1, alpha1=-0.5, alpha2=1.5),
    ]
    key = jax.random.PRNGKey(0)
    for cfg in configs:
        sched = CyclicAnnealing(**cfg)
        L, wu = cfg["L"], cfg["warmup_epochs"]
        key, sub = jax.random.split(key)
        rand_epoch = int(jax.random.randint(sub, (), 0, wu + L * cfg["M"]))
        epochs = [0, wu - 1, wu, wu + 1, wu + L // 2, wu + L, rand_epoch]
        for ep in epochs:
            got = sched.forward(ep)
            want = _reference(ep, L, wu, cfg["alpha1"], cfg["alpha2"])
            if abs(got - want) > 1e-5:
                ok = False
                print(f"MISMATCH cfg={cfg} epoch={ep} got={got} want={want}")
        if sched.current_epoch != len(epochs):
            ok = False
            print(f"current_epoch tracking failed for cfg={cfg}")

    if ok:
        print("KERNEL_OK")
</pallas_src>

<mosaic_0001>
module attributes {stable_mosaic.version = 11 : i64} {
  func.func @_annealing_table_kernel(%arg0: i32, %arg1: memref<3xf32, #tpu.memory_space<smem>>, %arg2: memref<1x128xf32, #tpu.memory_space<vmem>>) attributes {dimension_semantics = [#tpu.dimension_semantics<parallel>], iteration_bounds = array<i64: 1>, scalar_prefetch = 1 : i64, scratch_operands = 0 : i64, tpu.core_type = #tpu.core_type<tc>, window_params = [{transform_indices = @transform_0, window_bounds = array<i64: 1, 128>}]} {
    %c0 = arith.constant 0 : index
    %0 = memref.load %arg1[%c0] : memref<3xf32, #tpu.memory_space<smem>>
    %c1 = arith.constant 1 : index
    %1 = memref.load %arg1[%c1] : memref<3xf32, #tpu.memory_space<smem>>
    %c2 = arith.constant 2 : index
    %2 = memref.load %arg1[%c2] : memref<3xf32, #tpu.memory_space<smem>>
    %cst = arith.constant 1.280000e+02 : f32
    %3 = arith.mulf %2, %cst : f32
    %c1_i32 = arith.constant 1 : i32
    %4 = arith.muli %arg0, %c1_i32 : i32
    %5 = arith.sitofp %4 : i32 to f32
    %6 = arith.mulf %5, %3 : f32
    %7 = tpu.iota {dimensions = array<i32: 0>} : vector<1x128xi32>
    %8 = arith.sitofp %7 : vector<1x128xi32> to vector<1x128xf32>
    %9 = tpu.iota {dimensions = array<i32: 1>} : vector<1x128xi32>
    %10 = arith.sitofp %9 : vector<1x128xi32> to vector<1x128xf32>
    %11 = vector.broadcast %3 : f32 to vector<1x128xf32>
    %12 = arith.mulf %8, %11 : vector<1x128xf32>
    %13 = vector.broadcast %6 : f32 to vector<1x128xf32>
    %14 = arith.addf %12, %13 : vector<1x128xf32>
    %15 = vector.broadcast %2 : f32 to vector<1x128xf32>
    %16 = arith.mulf %10, %15 : vector<1x128xf32>
    %17 = arith.addf %14, %16 : vector<1x128xf32>
    %18 = math.cos %17 : vector<1x128xf32>
    %19 = vector.broadcast %1 : f32 to vector<1x128xf32>
    %20 = arith.mulf %19, %18 : vector<1x128xf32>
    %21 = vector.broadcast %0 : f32 to vector<1x128xf32>
    %22 = arith.addf %21, %20 : vector<1x128xf32>
    %c0_0 = arith.constant 0 : index
    %c0_1 = arith.constant 0 : index
    %23 = vector.load %arg2[%c0_0, %c0_1] : memref<1x128xf32, #tpu.memory_space<vmem>>, vector<1x128xf32>
    tpu.vector_store %arg2[%c0_0, %c0_1], %22 {strides = array<i32>} : memref<1x128xf32, #tpu.memory_space<vmem>>, vector<1x128xf32>,
    return
  }
  func.func @transform_0(%arg0: i32, %arg1: memref<3xf32, #tpu.memory_space<smem>>) -> (i32, i32) {
    %c0_i32 = arith.constant 0 : i32
    %c0_i32_0 = arith.constant 0 : i32
    return %arg0, %c0_i32 : i32, i32
  }
}

</mosaic_0001>

<llo_original>
// kernel: _run_table.1
$region0: #{_run_table.1}
  #allocation0 [shape = 'u32[]', space=smem, size = 0x4, offset = 0x4, fixed_abs, tag = 'smem constant byte address 0x4 - core index']
  #allocation1 [shape = 'u32[72,128]{1,0:T(1,128)}', space=vmem, size = 0x9000, scoped, tag = 'internal scratch']
  #allocation2 [shape = 's32[1]{0}', space=sflag, size = 0x4, scoped, tag = 'scoped memory for _run_table.1']
  #allocation3 [shape = 'u8[512]{0}', space=smem, size = 0x200, scoped, tag = 'prefetched SMEM operand 0']
  %s0 = inlined_call_operand.hbm [shape: f32[3], index: 0, kind: input, shape index: {}]
  %s1 = inlined_call_operand.hbm [shape: f32[1,128], index: 1, kind: output, shape index: {}]
  %s2 = sld [smem:[#allocation0]]
  $region10: #{_run_table.1} parent=0
    _
  %s4 = ssub.s32 1, %s2
  %s5 = scalar_select 0, %s4, %s2
  %s7 = sshll.u32 %s0, 4
  %s8 = int_to_ptr.hbm [resolvable:$true] %s7
  %10 = dma.hbm_to_smem %s8, 16, [#allocation3], [#allocation2]
  %12 = dma.done [#allocation2], 16
  %13 = sfence
  $region1: #{_run_table.1} parent=0
    #allocation4 [shape = 'u8[512]{0}', space=vmem, size = 0x400, scoped, tag = 'output window, operand 0, single buffered']
    #allocation5 [shape = 's32[1]{0}', space=sflag, size = 0x4, scoped, tag = 'scoped memory for _run_table.1']
    %14 = vsyncpa [#allocation5], 0
    %s15 = sld [smem:[#allocation3]]
    %s16 = sld [smem:[#allocation3 + $0x1]]
    %s17 = sld [smem:[#allocation3 + $0x2]]
    %s18 = smul.f32 %s17, 128.0
    %s19 = scvt.s32.f32 0
    %s20 = smul.f32 %s19, %s18
    %v21 = vlaneseq
    %v22 = vshrl.u32 %v21, 7
    %v23 = vcvt.s32.f32 %v22
    %v24 = vlaneseq
    %v25 = vand.u32 %v24, 127
    %v26 = vcvt.s32.f32 %v25
    %v27 = vstv %s18
    %v28 = vmul.f32 %v23, %v27
    %v29 = vstv %s20
    %v30 = vadd.f32 %v28, %v29
    %v31 = vstv %s17
    %v32 = vmul.f32 %v26, %v31
    %v33 = vadd.f32 %v30, %v32
    %v34 = vand.u32 2147483647, %v33
    %vm35 = vcmp.le.f32.partialorder %v34, 0.7853982
    %vm36 = vcmp.lt.s32.totalorder %v33, 0
    %v37 = vand.u32 %v33, 2139095040
    %v38 = vshrl.u32 %v37, 23
    %v39 = vsub.s32 %v38, 127
    %v40 = vand.u32 2147483647, %v33
    %v41 = vand.u32 %v40, 8388607
    %v42 = vor.u32 %v41, 8388608
    %v43 = vsub.s32 0, %v42
    %v44 = vadd.s32 %v39, 1
    %vm45 = vcmp.gt.s32.totalorder %v44, 0
    %v46 = vsel %vm45, %v44, 0
    %v47 = vshrl.u32 %v46, 5
    %v48 = vand.u32 %v46, 31
    %v49 = vsub.s32 32, %v48
    %v50 = vshrl.u32 683565275, %v49
    %v51 = vshll.u32 683565275, %v48
    %v52 = vshrl.u32 2475754826, %v49
    %v53 = vor.u32 %v51, %v52
    %v54 = vshll.u32 2475754826, %v48
    %v55 = vshrl.u32 2131351028, %v49
    %v56 = vor.u32 %v54, %v55
    %v57 = vshll.u32 2131351028, %v48
    %v58 = vshrl.u32 2102212464, %v49
    %v59 = vor.u32 %v57, %v58
    %v60 = vshll.u32 2102212464, %v48
    %v61 = vshrl.u32 920167782, %v49
    %v62 = vor.u32 %v60, %v61
    %v63 = vshll.u32 920167782, %v48
    %v64 = vshrl.u32 1326507024, %v49
    %v65 = vor.u32 %v63, %v64
    %vm66 = vcmp.lt.s32.totalorder %v47, 1
    %vm67 = vcmp.lt.s32.totalorder %v47, 2
    %vm68 = vcmp.lt.s32.totalorder %v47, 3
    %vm69 = vcmp.lt.s32.totalorder %v47, 4
    %v70 = vsel %vm66, %v50, %v53
    %v71 = vsel %vm69, %v59, 2102212464
    %v72 = vsel %vm68, %v56, %v71
    %v73 = vsel %vm67, %v70, %v72
    %v74 = vsel %vm66, %v53, %v56
    %v75 = vsel %vm69, %v62, 920167782
    %v76 = vsel %vm68, %v59, %v75
    %v77 = vsel %vm67, %v74, %v76
    %v78 = vsel %vm66, %v56, %v59
    %v79 = vsel %vm69, %v65, 1326507024
    %v80 = vsel %vm68, %v62, %v79
    %v81 = vsel %vm67, %v78, %v80
    %v82 = vshll.u32 %v42, 8
    %v83 = vand.u32 %v82, 65535
    %v84 = vshrl.u32 %v82, 16
    %v85 = vand.u32 %v81, 65535
    %v86 = vshrl.u32 %v81, 16
    %v87 = vmul.u32 %v83, %v85
    %v88 = vmul.u32 %v83, %v86
    %v89 = vmul.u32 %v84, %v85
    %v90 = vmul.u32 %v84, %v86
    %v91 = vshll.u32 %v88, 16
    %v92 = vshrl.u32 %v88, 16
    %v93 = vshll.u32 %v89, 16
    %v94 = vshrl.u32 %v89, 16
    %vm95 = vc.u32 %v87, %v91
    %v96 = vsel %vm95, 1, 0
    %v97 = vadd.s32 %v87, %v91
    %v98 = vadd.s32 %v90, %v96
    %vm99 = vc.u32 %v97, %v93
    %v100 = vsel %vm99, 1, 0
    %v101 = vadd.s32 %v97, %v93
    %v102 = vadd.s32 %v98, %v100
    %v103 = vadd.s32 %v102, %v92
    %v104 = vadd.s32 %v103, %v94
    %v105 = vand.u32 %v82, 65535
    %v106 = vshrl.u32 %v82, 16
    %v107 = vand.u32 %v77, 65535
    %v108 = vshrl.u32 %v77, 16
    %v109 = vmul.u32 %v105, %v107
    %v110 = vmul.u32 %v105, %v108
    %v111 = vmul.u32 %v106, %v107
    %v112 = vmul.u32 %v106, %v108
    %v113 = vshll.u32 %v110, 16
    %v114 = vshrl.u32 %v110, 16
    %v115 = vshll.u32 %v111, 16
    %v116 = vshrl.u32 %v111, 16
    %vm117 = vc.u32 %v109, %v113
    %v118 = vsel %vm117, 1, 0
    %v119 = vadd.s32 %v109, %v113
    %v120 = vadd.s32 %v112, %v118
    %vm121 = vc.u32 %v119, %v115
    %v122 = vsel %vm121, 1, 0
    %v123 = vadd.s32 %v119, %v115
    %v124 = vadd.s32 %v120, %v122
    %v125 = vadd.s32 %v124, %v114
    %v126 = vadd.s32 %v125, %v116
    %v127 = vmul.u32 %v82, %v73
    %v128 = vadd.s32 %v104, %v123
    %vm129 = vc.u32 %v104, %v123
    %v130 = vadd.s32 %v126, 1
    %v131 = vsel %vm129, %v130, %v126
    %v132 = vadd.s32 %v127, %v131
    %v133 = vadd.s32 %v132, 536870912
    %v134 = vshrl.u32 %v133, 30
    %v135 = vshll.u32 %v134, 30
    %v136 = vsub.s32 %v132, %v135
    %vm137 = vcmp.lt.s32.totalorder %v136, 0
    %v138 = vsub.s32 0, %v136
    %v139 = vsel %vm137, %v138, %v136
    %v140 = vclz %v139
    %v141 = vsub.s32 %v140, 2
    %vm142 = vcmp.gt.s32.totalorder 0, %v141
    %v143 = vsel %vm142, 0, %v141
    %v144 = vsub.s32 32, %v143
    %v145 = vshll.u32 %v136, %v143
    %v146 = vshrl.u32 %v128, %v144
    %v147 = vor.u32 %v145, %v146
    %v148 = vsub.s32 4294967266, %v143
    %v149 = vadd.s32 %v148, 127
    %v150 = vshll.u32 %v149, 23
    %v151 = vor.u32 4788187, %v150
    %v152 = vand.u32 2147483647, %v151
    %v154 = vcvt.s32.f32 %v147
    %v155 = vmul.f32 %v154, %v152
    %v156 = vxor.u32 %v155, 2147483648
    %v157 = vsel %vm36, %v156, %v155
    %v158 = vsub.s32 4, %v134
    %v159 = vsel %vm36, %v158, %v134
    %v160 = vsel %vm35, %v33, %v157
    %v161 = vsel %vm35, 0, %v159
    %v162 = vmul.f32 %v160, %v160
    %v163 = vmul.f32 %v162, -0.001358992
    %v164 = vadd.f32 %v163, 0.041655596
    %v165 = vmul.f32 %v162, %v164
    %v166 = vadd.f32 %v165, -0.4999988
    %v167 = vmul.f32 %v162, %v166
    %v168 = vadd.f32 1.0, %v167
    %v169 = vmul.f32 %v160, %v160
    %v170 = vmul.f32 %v169, -0.00019511016
    %v171 = vadd.f32 %v170, 0.008332121
    %v172 = vmul.f32 %v169, %v171
    %v173 = vadd.f32 %v172, -0.16666654
    %v174 = vmul.f32 %v169, %v173
    %v175 = vadd.f32 %v174, 1.0
    %v176 = vmul.f32 %v175, %v160
    %vm177 = vweird.f32 %v33
    %v178 = vand.u32 %v161, 3
    %vm179 = vcmp.lt.s32.totalorder %v178, 2
    %vm180 = vcmp.eq.s32.totalorder %v178, 0
    %v181 = vxor.u32 %v176, 2147483648
    %v182 = vsel %vm180, %v168, %v181
    %vm183 = vcmp.eq.s32.totalorder %v178, 2
    %v184 = vxor.u32 %v168, 2147483648
    %v185 = vsel %vm183, %v184, %v176
    %v186 = vsel %vm179, %v182, %v185
    %v187 = vsel %vm177, nan, %v186
    %v188 = vstv %s16
    %v189 = vmul.f32 %v188, %v187
    %v190 = vstv %s15
    %v191 = vadd.f32 %v190, %v189
    %192 = vst [vmem:[#allocation4] sm:$0x1] %v191
    // Predicated region
    $region2: #{_run_table.1} parent=1 // pred_check
      _
    $region3: #{_run_table.1} parent=1 // pred_check_branch
      %194 = sbr.rel (0) target = $region5
    $region4: #{_run_table.1} parent=1 // pred_region
      %196 = vsyncadd [#allocation5], 0
      %s198 = sshll.u32 [#allocation4], 4
      %s199 = int_to_ptr.vmem [resolvable:$true] %s198
      %s200 = sshll.u32 %s1, 4
      %s201 = int_to_ptr.hbm [resolvable:$true] %s200
      %203 = dma.vmem_to_hbm [thread:$0]  %s199, 16, %s201, [#allocation5]
    $region5: #{_run_table.1} parent=1 // pred_fallthru
      _
    // Predicated region
    $region6: #{_run_table.1} parent=1 // pred_check
      _
    $region7: #{_run_table.1} parent=1 // pred_check_branch
      %205 = sbr.rel (0) target = $region9
    $region8: #{_run_table.1} parent=1 // pred_region
      %207 = dma.done [#allocation5], 16
    $region9: #{_run_table.1} parent=1 // pred_fallthru
      _
    %208 = vsyncpa [#allocation5], 1

</llo_original>
